<compile_context>
chip_gen: v6e
topology: v6e:2x2x1
jax: 0.10.0
libtpu: 0.0.40
codegen_flags: <defaults>
</compile_context>

<pallas_src>
import jax
import jax.numpy as jnp
import numpy as np
from jax.experimental import pallas as pl
from jax.experimental.pallas import tpu as pltpu

EPS = 1e-5
C = 4           # BatchNorm1d channels
L = 10          # per-channel length (40 = 4 * 10)
HID = C * L     # 40
IN = 2          # fc1 in_features
NMOM = 5        # Sx0, Sx1, Sx0^2, Sx1^2, Sx0*x1


def _round_up(x, m):
    return ((x + m - 1) // m) * m


def moments_kernel(x_ref, m_ref):
    """Pass 1: per-tile second-order x moments (all BN stats derive from these).

    x_ref: (2, T) batch-on-lanes tile.  m_ref: (5, 128) lane-broadcast sums.
    """
    x = x_ref[...]                                   # (2, T)
    xx = x * x                                       # (2, T): x0^2, x1^2
    cross = x[0:1, :] * x[1:2, :]                    # (1, T): x0*x1
    feats = jnp.concatenate([x, xx, cross], axis=0)  # (5, T)
    sums = jnp.sum(feats, axis=1, keepdims=True)     # (5, 1)
    # Lane-dense store; the wrapper reads lane 0 of each tile block.
    m_ref[...] = jnp.broadcast_to(sums, m_ref.shape)


def affine_softmax_kernel(x_ref, a_ref, b_ref, o_ref):
    """Pass 2: logits = A @ x + b (fc1, BN, fc2 folded) -> softmax.

    x_ref: (2, T), a_ref: (4, 2), b_ref: (4, 1), o_ref: (4, T).
    """
    logits = (a_ref[:, 0:1] * x_ref[0:1, :] +
              a_ref[:, 1:2] * x_ref[1:2, :] +
              b_ref[...])                                        # (4, T) VPU
    # Softmax over the 4 classes: a cheap 4-sublane reduce in this layout.
    m = jnp.max(logits, axis=0, keepdims=True)
    e = jnp.exp(logits - m)
    denom = jnp.sum(e, axis=0, keepdims=True)
    o_ref[...] = e * pl.reciprocal(denom, approx=False)


def batchnorm_net(x, w1, w2, gamma, beta, *, tile_n=16384):
    """Forward pass of BatchNormNet (training-mode batch statistics).

    x:  (N, 2) float32 (PyTorch layout)
    w1: (40, 2) = fc1.weight   w2: (4, 40) = fc2.weight   gamma/beta: (4,)
    tile_n: batch rows per grid step; rounded up to a multiple of 128.
    """
    n = x.shape[0]
    tile = min(int(tile_n), _round_up(max(n, 1), 128))
    tile = _round_up(tile, 128)
    n_pad = _round_up(n, tile)
    num_tiles = pl.cdiv(n_pad, tile)

    # Batch-on-lanes layout.  No padded-copy when n is already tile-aligned;
    # zero padding contributes 0 to every moment sum (we divide by n below).
    x_t = x.astype(jnp.float32).T                                   # (2, N)
    if n_pad != n:
        x_t = jnp.pad(x_t, ((0, 0), (0, n_pad - n)))

    cparams = pltpu.CompilerParams(
        # TODO(synk): on v7x, pltpu.CORE_PARALLEL (or pl.core_map over a
        # tensorcore mesh) would shard the batch axis across both TCs; kept
        # "parallel" here so the same script runs cleanly on v5e/v6e.
        dimension_semantics=("parallel",),
        vmem_limit_bytes=32 * 1024 * 1024,
    )
    resident = lambda i: (0, 0)          # tiny params stay VMEM-resident

    # ---- Pass 1: per-tile x-moments (full-batch BN stats must stay global). ----
    moments_p = pl.pallas_call(
        moments_kernel,
        grid=(num_tiles,),
        out_shape=jax.ShapeDtypeStruct((NMOM, num_tiles * 128), jnp.float32),
        in_specs=[pl.BlockSpec((IN, tile), lambda i: (0, i))],
        out_specs=pl.BlockSpec((NMOM, 128), lambda i: (0, i)),
        compiler_params=cparams,
    )(x_t)

    # Tiny cross-tile reduction + analytic BN stats in plain JAX.
    m = moments_p.reshape(NMOM, num_tiles, 128)[:, :, 0].sum(axis=1)   # (5,)
    s0, s1, s00, s11, s01 = m[0], m[1], m[2], m[3], m[4]
    cnt = jnp.float32(n * L)

    w1f = w1.astype(jnp.float32)
    w2f = w2.astype(jnp.float32)
    wq = w1f.reshape(C, L, IN)                                          # (4, 10, 2)
    # mean_c  = (1/(10 n)) * sum_{j in c} (w_j0 * Sx0 + w_j1 * Sx1)
    mean = (wq[..., 0].sum(axis=1) * s0 + wq[..., 1].sum(axis=1) * s1) / cnt
    # E[h^2]_c = (1/(10 n)) * sum_{j in c} (w_j0^2 Sx0^2 + 2 w_j0 w_j1 Sx0x1
    #                                       + w_j1^2 Sx1^2)
    e_h2 = ((wq[..., 0] ** 2).sum(axis=1) * s00 +
            2.0 * (wq[..., 0] * wq[..., 1]).sum(axis=1) * s01 +
            (wq[..., 1] ** 2).sum(axis=1) * s11) / cnt
    var = jnp.maximum(e_h2 - mean * mean, 0.0)                          # biased var
    scale = gamma.astype(jnp.float32) * jax.lax.rsqrt(var + EPS)        # (4,)
    shift = beta.astype(jnp.float32) - mean * scale                     # (4,)
    scale_w = jnp.repeat(scale, L)                                      # (40,)
    shift_w = jnp.repeat(shift, L)                                      # (40,)

    # Everything before the softmax is affine: fold fc1 -> BN -> fc2 into one
    # (4, 2) map A and bias b computed once in the wrapper.
    a_mat = w2f @ (scale_w[:, None] * w1f)                              # (4, 2)
    b_vec = (w2f @ shift_w)[:, None]                                    # (4, 1)
    # TODO(synk): running_mean/running_var momentum update (stateful BN side
    # effect) is not modeled; forward output uses batch stats as in training.

    # ---- Pass 2: precomputed affine + softmax, batch-parallel HBM stream. ----
    out_t = pl.pallas_call(
        affine_softmax_kernel,
        grid=(num_tiles,),
        out_shape=jax.ShapeDtypeStruct((C, n_pad), jnp.float32),
        in_specs=[
            pl.BlockSpec((IN, tile), lambda i: (0, i)),
            pl.BlockSpec((C, IN), resident),
            pl.BlockSpec((C, 1), resident),
        ],
        out_specs=pl.BlockSpec((C, tile), lambda i: (0, i)),
        compiler_params=cparams,
    )(x_t, a_mat, b_vec)

    # Module contract is (N, 4); keep the wrapper transpose.  If the consumer
    # can take class-major (4, N) directly, drop this for ~2x less output HBM.
    return out_t[:, :n].T                                               # (N, 4)


def reference(x, w1, w2, gamma, beta):
    h = x @ w1.T                                # (N, 40)
    hr = h.reshape(-1, C, L)                    # (N, 4, 10)
    mu = hr.mean(axis=(0, 2), keepdims=True)
    var = ((hr - mu) ** 2).mean(axis=(0, 2), keepdims=True)
    hn = (hr - mu) / jnp.sqrt(var + EPS)
    hn = hn * gamma[None, :, None] + beta[None, :, None]
    logits = hn.reshape(-1, HID) @ w2.T         # (N, 4)
    return jax.nn.softmax(logits, axis=1)


if __name__ == "__main__":
    key = jax.random.PRNGKey(0)
    k_x, k_w1, k_w2, k_g, k_b = jax.random.split(key, 5)

    N = 8
    x = jax.random.normal(k_x, (N, IN), dtype=jnp.float32)
    # PyTorch-native weight layouts: fc1.weight (40, 2), fc2.weight (4, 40).
    w1 = jax.random.normal(k_w1, (HID, IN), dtype=jnp.float32) * 0.5
    w2 = jax.random.normal(k_w2, (C, HID), dtype=jnp.float32) * 0.2
    # BatchNorm affine params (perturbed from the PyTorch default init so the
    # gamma/beta folding path is actually exercised).
    gamma = 1.0 + 0.1 * jax.random.normal(k_g, (C,), dtype=jnp.float32)
    beta = 0.1 * jax.random.normal(k_b, (C,), dtype=jnp.float32)

    out = batchnorm_net(x, w1, w2, gamma, beta)
    out = jax.block_until_ready(out)

    ref = reference(x, w1, w2, gamma, beta)
    np.testing.assert_allclose(np.asarray(out), np.asarray(ref),
                               rtol=1e-5, atol=1e-5)
    print("KERNEL_OK")
</pallas_src>

<mosaic_0001>
module attributes {stable_mosaic.version = 11 : i64} {
  func.func @moments_kernel(%arg0: i32, %arg1: memref<2x128xf32, #tpu.memory_space<vmem>>, %arg2: memref<5x128xf32, #tpu.memory_space<vmem>>) attributes {dimension_semantics = [#tpu.dimension_semantics<parallel>], iteration_bounds = array<i64: 1>, scalar_prefetch = 0 : i64, scratch_operands = 0 : i64, tpu.core_type = #tpu.core_type<tc>, window_params = [{transform_indices = @transform_0, window_bounds = array<i64: 2, 128>}, {transform_indices = @transform_1, window_bounds = array<i64: 5, 128>}]} {
    %c0 = arith.constant 0 : index
    %c0_0 = arith.constant 0 : index
    %0 = vector.load %arg1[%c0, %c0_0] : memref<2x128xf32, #tpu.memory_space<vmem>>, vector<2x128xf32>
    %1 = arith.mulf %0, %0 : vector<2x128xf32>
    %2 = vector.extract_strided_slice %0 {offsets = [0, 0], sizes = [1, 128], strides = [1, 1]} : vector<2x128xf32> to vector<1x128xf32>
    %3 = vector.extract_strided_slice %0 {offsets = [1, 0], sizes = [1, 128], strides = [1, 1]} : vector<2x128xf32> to vector<1x128xf32>
    %4 = arith.mulf %2, %3 : vector<1x128xf32>
    %5 = tpu.concatenate %0, %1, %4 in 0 : vector<2x128xf32>, vector<2x128xf32>, vector<1x128xf32> -> vector<5x128xf32>
    %cst = arith.constant dense<0.000000e+00> : vector<5xf32>
    %6 = vector.multi_reduction <add>, %5, %cst [1] : vector<5x128xf32> to vector<5xf32>
    %7 = vector.shape_cast %6 : vector<5xf32> to vector<5x1xf32>
    %8 = vector.shape_cast %7 : vector<5x1xf32> to vector<5x1xf32>
    %9 = vector.broadcast %8 : vector<5x1xf32> to vector<5x128xf32>
    %c0_1 = arith.constant 0 : index
    %c0_2 = arith.constant 0 : index
    %10 = vector.load %arg2[%c0_1, %c0_2] : memref<5x128xf32, #tpu.memory_space<vmem>>, vector<5x128xf32>
    tpu.vector_store %arg2[%c0_1, %c0_2], %9 {strides = array<i32>} : memref<5x128xf32, #tpu.memory_space<vmem>>, vector<5x128xf32>,
    return
  }
  func.func @transform_0(%arg0: i32) -> (i32, i32) {
    %c0_i32 = arith.constant 0 : i32
    %c0_i32_0 = arith.constant 0 : i32
    return %c0_i32, %arg0 : i32, i32
  }
  func.func @transform_1(%arg0: i32) -> (i32, i32) {
    %c0_i32 = arith.constant 0 : i32
    %c0_i32_0 = arith.constant 0 : i32
    return %c0_i32, %arg0 : i32, i32
  }
}

</mosaic_0001>

<llo_original>
// kernel: tpu_custom_call.1
$region0: #{tpu_custom_call.1}
  #allocation0 [shape = 'u32[]', space=smem, size = 0x4, offset = 0x4, fixed_abs, tag = 'smem constant byte address 0x4 - core index']
  #allocation1 [shape = 'u32[144,128]{1,0:T(1,128)}', space=vmem, size = 0x12000, scoped, tag = 'internal scratch']
  %s0 = inlined_call_operand.hbm [shape: f32[2,128], index: 0, kind: input, shape index: {}]
  %s1 = inlined_call_operand.hbm [shape: f32[5,128], index: 1, kind: output, shape index: {}]
  %s2 = sld [smem:[#allocation0]]
  $region18: #{tpu_custom_call.1} parent=0
    _
  %s4 = ssub.s32 1, %s2
  %s5 = scalar_select 0, %s4, %s2
  $region1: #{tpu_custom_call.1} parent=0
    #allocation2 [shape = 'u8[1024]{0}', space=vmem, size = 0x400, scoped, tag = 'input window, operand 0, single buffered']
    #allocation3 [shape = 's32[1]{0}', space=sflag, size = 0x4, scoped, tag = 'scoped memory for tpu_custom_call.1']
    #allocation4 [shape = 's32[1]{0}', space=sflag, size = 0x4, scoped, tag = 'scoped memory for tpu_custom_call.1']
    #allocation5 [shape = 'u8[4096]{0}', space=vmem, size = 0x1000, scoped, tag = 'output window, operand 0, single buffered']
    %6 = vsyncpa [#allocation3], 0
    %7 = vsyncpa [#allocation4], 0
    // Predicated region
    $region2: #{tpu_custom_call.1} parent=1 // pred_check
      _
    $region3: #{tpu_custom_call.1} parent=1 // pred_check_branch
      %9 = sbr.rel (0) target = $region5
    $region4: #{tpu_custom_call.1} parent=1 // pred_region
      %s11 = ssub.s32 32, 32
      %12 = vsyncadd [#allocation3], %s11
      %s14 = sshll.u32 [#allocation2], 4
      %s15 = int_to_ptr.vmem [resolvable:$true] %s14
      %17 = dma.hbm_to_vmem [thread:$0]  %s0, 32, %s15, [#allocation3]
    $region5: #{tpu_custom_call.1} parent=1 // pred_fallthru
      _
    // Predicated region
    $region6: #{tpu_custom_call.1} parent=1 // pred_check
      _
    $region7: #{tpu_custom_call.1} parent=1 // pred_check_branch
      %19 = sbr.rel (0) target = $region9
    $region8: #{tpu_custom_call.1} parent=1 // pred_region
      %20 = dma.done [#allocation3], 32
    $region9: #{tpu_custom_call.1} parent=1 // pred_fallthru
      _
    %v21 = vld [vmem:[#allocation2] sm:$0x3]
    %v22 = vmul.f32 %v21, %v21
    %v24 = vrot.slane %v21, 1
    %v26 = vmul.f32 %v21, %v24
    %v28 = vrot.slane %v22, 6
    %v31 = vrot.slane %v26, 4
    %vm33 = vcmask 1041408
    %v34 = vsel %vm33, %v21, %v28
    %vm35 = vcmask 1043456
    %v36 = vsel %vm35, %v34, %v31
    %vm37 = vcmask 1044480
    %v38 = vsel %vm37, %v36, 0.0
    %39 = vadd.xlane.f32.xlu0 %v38
    %v40 = vpop.xlane.xlu0 %39
    %41 = vst [vmem:[#allocation5] sm:$0x1f] %v40
    // Predicated region
    $region10: #{tpu_custom_call.1} parent=1 // pred_check
      _
    $region11: #{tpu_custom_call.1} parent=1 // pred_check_branch
      %43 = sbr.rel (0) target = $region13
    $region12: #{tpu_custom_call.1} parent=1 // pred_region
      %s45 = ssub.s32 128, 128
      %46 = vsyncadd [#allocation4], %s45
      %s48 = sshll.u32 [#allocation5], 4
      %s49 = int_to_ptr.vmem [resolvable:$true] %s48
      %51 = dma.vmem_to_hbm [thread:$0]  %s49, 128, %s1, [#allocation4]
    $region13: #{tpu_custom_call.1} parent=1 // pred_fallthru
      _
    // Predicated region
    $region14: #{tpu_custom_call.1} parent=1 // pred_check
      _
    $region15: #{tpu_custom_call.1} parent=1 // pred_check_branch
      %53 = sbr.rel (0) target = $region17
    $region16: #{tpu_custom_call.1} parent=1 // pred_region
      %54 = dma.done [#allocation4], 128
    $region17: #{tpu_custom_call.1} parent=1 // pred_fallthru
      _
    %55 = vsyncpa [#allocation3], 1
    %56 = vsyncpa [#allocation4], 1

</llo_original>
